<compile_context>
chip_gen: v6e
topology: v6e:2x2x1
jax: 0.10.0
libtpu: 0.0.40
codegen_flags: <defaults>
</compile_context>

<pallas_src>
import functools

import jax
import jax.numpy as jnp
from jax.experimental import pallas as pl
from jax.experimental.pallas import tpu as pltpu

_LANE = 128
_SUBLANE = 8


def _ce_label_smooth_kernel(logits_ref, target_ref, partial_ref, row_acc_ref,
                            *, epsilon, num_classes, n_rows, tile_n,
                            blocks_per_split):
    s = pl.program_id(0)      # TensorCore split ("parallel")
    i = pl.program_id(1)      # row-block within the split ("arbitrary")

    # Reset the per-row accumulator at the start of each split.
    @pl.when(i == 0)
    def _():
        row_acc_ref[...] = jnp.zeros_like(row_acc_ref)

    x = logits_ref[...].astype(jnp.float32)                  # (tn, C)
    tn, C = x.shape

    # Numerically-stable row logsumexp (single exp pass, (tn,1) reductions).
    m = jnp.max(x, axis=1, keepdims=True)
    lse = jnp.log(jnp.sum(jnp.exp(x - m), axis=1, keepdims=True)) + m

    # Row sum of logits (uniform eps/C part of the smoothed target).
    row_sum = jnp.sum(x, axis=1, keepdims=True)

    # Target logit x[r, t_r] via iota/compare (no persistent one_hot tile).
    cls_ids = jax.lax.broadcasted_iota(jnp.int32, (tn, C), 1)
    tgt_logit = jnp.sum(jnp.where(cls_ids == target_ref[...], x, 0.0),
                        axis=1, keepdims=True)

    # Label-smoothed CE per row:
    #   (1-eps)*(lse - x[r,t]) + (eps/C)*sum_c (lse - x[r,c])
    # = lse - (1-eps)*x[r,t] - (eps/C)*row_sum
    per_row = (lse - (1.0 - epsilon) * tgt_logit
               - (epsilon / num_classes) * row_sum)

    # Mask rows past the true batch size (ragged last tile / clamped blocks).
    block = s * blocks_per_split + i
    row_ids = block * tile_n + jax.lax.broadcasted_iota(jnp.int32, (tn, 1), 0)
    per_row = jnp.where(row_ids < n_rows, per_row, 0.0)

    row_acc_ref[...] += per_row

    # One cross-row reduce per split, on its last grid step; lane-dense store.
    @pl.when(i == blocks_per_split - 1)
    def _():
        tot = jnp.sum(row_acc_ref[...], axis=0, keepdims=True)       # (1, 1)
        partial_ref[...] = jnp.broadcast_to(tot, partial_ref.shape)


def _pick_tile_n(n_rows, num_classes, budget_bytes):
    """Largest batch tile whose double-buffered working set fits the budget."""
    padded_c = max(_LANE, -(-num_classes // _LANE) * _LANE)
    # 2x logits buffer + 2x (lane-padded) target buffer + per-row scratch.
    bytes_per_row = 2 * padded_c * 4 + 2 * _LANE * 4 + _LANE * 4
    tile_n = budget_bytes // bytes_per_row
    tile_n = max(_SUBLANE, min(2048, (tile_n // _SUBLANE) * _SUBLANE))
    return n_rows if tile_n >= n_rows else tile_n


def cross_entropy_label_smooth(logits, target, *, epsilon, tile_n=None,
                               num_splits=None,
                               vmem_budget_bytes=16 * 1024 * 1024):
    """logits: (N, C) float (f32 or bf16), target: (N,) int -> scalar f32."""
    N, C = logits.shape
    if tile_n is None:
        tile_n = _pick_tile_n(N, C, vmem_budget_bytes)
    target2d = target.astype(jnp.int32).reshape(N, 1)

    blocks_total = -(-N // tile_n)
    if num_splits is None:
        # Split batch across the 2 TensorCores of v7x; harmless on v5e/v6e.
        num_splits = 2 if blocks_total >= 2 else 1
    blocks_per_split = -(-blocks_total // num_splits)
    last_block = blocks_total - 1

    def in_map(s, i):
        # Clamp so over-provisioned grid steps never DMA out of bounds; their
        # rows are masked out inside the kernel.
        return (jnp.minimum(s * blocks_per_split + i, last_block), 0)

    kernel = functools.partial(
        _ce_label_smooth_kernel,
        epsilon=float(epsilon), num_classes=C, n_rows=N,
        tile_n=tile_n, blocks_per_split=blocks_per_split)

    # VMEM: raise v5e's 16 MiB default scoped limit, stay under v7x's 64 MiB.
    padded_c = max(_LANE, -(-C // _LANE) * _LANE)
    vmem_needed = (2 * tile_n * padded_c * 4      # double-buffered logits
                   + 2 * tile_n * _LANE * 4       # double-buffered target
                   + tile_n * _LANE * 4           # per-row scratch
                   + (4 << 20))                   # headroom
    vmem_limit = int(min(48 << 20, max(32 << 20, vmem_needed)))

    partials = pl.pallas_call(
        kernel,
        out_shape=jax.ShapeDtypeStruct((num_splits * _SUBLANE, _LANE),
                                       jnp.float32),
        grid_spec=pltpu.PrefetchScalarGridSpec(
            num_scalar_prefetch=0,
            grid=(num_splits, blocks_per_split),
            in_specs=[
                pl.BlockSpec((tile_n, C), in_map),   # logits tile
                pl.BlockSpec((tile_n, 1), in_map),   # target tile
            ],
            out_specs=pl.BlockSpec((_SUBLANE, _LANE), lambda s, i: (s, 0)),
            scratch_shapes=[pltpu.VMEM((tile_n, 1), jnp.float32)],
        ),
        compiler_params=pltpu.CompilerParams(
            dimension_semantics=("parallel", "arbitrary"),
            vmem_limit_bytes=vmem_limit),
    )(logits, target2d)

    # Single divide at the end (better numerics than per-tile division).
    return jnp.sum(partials[::_SUBLANE, 0]) / N


def _reference(logits, target, epsilon):
    # Pure-JAX reference matching the PyTorch forward.
    log_probs = jax.nn.log_softmax(logits, axis=1)
    one_hot = jax.nn.one_hot(target, logits.shape[1], dtype=log_probs.dtype)
    smoothed = (1.0 - epsilon) * one_hot + epsilon / logits.shape[1]
    return jnp.sum(jnp.mean(-smoothed * log_probs, axis=0))


if __name__ == "__main__":
    epsilon = 0.1

    # Primary small-shape example (matches the module's (N, num_classes) input).
    num_classes, batch = 32, 16
    key = jax.random.PRNGKey(0)
    k1, k2, k3, k4 = jax.random.split(key, 4)
    logits = jax.random.normal(k1, (batch, num_classes), dtype=jnp.float32)
    target = jax.random.randint(k2, (batch,), 0, num_classes, dtype=jnp.int32)

    loss = cross_entropy_label_smooth(logits, target, epsilon=epsilon)
    loss = jax.block_until_ready(loss)
    ref = _reference(logits, target, epsilon)
    assert jnp.allclose(loss, ref, rtol=1e-5, atol=1e-5), (loss, ref)

    # Secondary check: ragged batch, multi-block grid, 2-way TensorCore split.
    n2, c2 = 900, 200
    logits2 = jax.random.normal(k3, (n2, c2), dtype=jnp.float32)
    target2 = jax.random.randint(k4, (n2,), 0, c2, dtype=jnp.int32)
    loss2 = cross_entropy_label_smooth(logits2, target2, epsilon=epsilon,
                                       tile_n=64)
    loss2 = jax.block_until_ready(loss2)
    ref2 = _reference(logits2, target2, epsilon)
    assert jnp.allclose(loss2, ref2, rtol=1e-4, atol=1e-5), (loss2, ref2)

    print("KERNEL_OK")
</pallas_src>

<mosaic_0001>
module attributes {stable_mosaic.version = 11 : i64} {
  func.func @_ce_label_smooth_kernel(%arg0: i32, %arg1: i32, %arg2: memref<16x32xf32, #tpu.memory_space<vmem>>, %arg3: memref<16x1xi32, #tpu.memory_space<vmem>>, %arg4: memref<8x128xf32, #tpu.memory_space<vmem>>, %arg5: memref<16x1xf32, #tpu.memory_space<vmem>>) attributes {dimension_semantics = [#tpu.dimension_semantics<parallel>, #tpu.dimension_semantics<arbitrary>], iteration_bounds = array<i64: 1, 1>, scalar_prefetch = 0 : i64, scratch_operands = 1 : i64, tpu.core_type = #tpu.core_type<tc>, window_params = [{transform_indices = @transform_0, window_bounds = array<i64: 16, 32>}, {transform_indices = @transform_1, window_bounds = array<i64: 16, 1>}, {transform_indices = @transform_2, window_bounds = array<i64: 8, 128>}]} {
    %c0_i32 = arith.constant 0 : i32
    %0 = arith.cmpi eq, %arg1, %c0_i32 : i32
    %1 = arith.extui %0 : i1 to i32
    %c0_i32_0 = arith.constant 0 : i32
    %2 = arith.cmpi ne, %1, %c0_i32_0 : i32
    scf.if %2 {
      %cst_18 = arith.constant 0.000000e+00 : f32
      %45 = vector.broadcast %cst_18 : f32 to vector<16x1xf32>
      %c0_19 = arith.constant 0 : index
      %c0_20 = arith.constant 0 : index
      %46 = vector.load %arg5[%c0_19, %c0_20] : memref<16x1xf32, #tpu.memory_space<vmem>>, vector<16x1xf32>
      tpu.vector_store %arg5[%c0_19, %c0_20], %45 {strides = array<i32>} : memref<16x1xf32, #tpu.memory_space<vmem>>, vector<16x1xf32>,
    } else {
    }
    %c0 = arith.constant 0 : index
    %c0_1 = arith.constant 0 : index
    %3 = vector.load %arg2[%c0, %c0_1] : memref<16x32xf32, #tpu.memory_space<vmem>>, vector<16x32xf32>
    %cst = arith.constant dense<0xFF800000> : vector<16xf32>
    %4 = vector.multi_reduction <maximumf>, %3, %cst [1] : vector<16x32xf32> to vector<16xf32>
    %5 = vector.shape_cast %4 : vector<16xf32> to vector<16x1xf32>
    %6 = vector.broadcast %5 : vector<16x1xf32> to vector<16x32xf32>
    %7 = arith.subf %3, %6 : vector<16x32xf32>
    %8 = math.exp %7 : vector<16x32xf32>
    %cst_2 = arith.constant dense<0.000000e+00> : vector<16xf32>
    %9 = vector.multi_reduction <add>, %8, %cst_2 [1] : vector<16x32xf32> to vector<16xf32>
    %10 = vector.shape_cast %9 : vector<16xf32> to vector<16x1xf32>
    %11 = math.log %10 : vector<16x1xf32>
    %12 = arith.addf %11, %5 : vector<16x1xf32>
    %cst_3 = arith.constant dense<0.000000e+00> : vector<16xf32>
    %13 = vector.multi_reduction <add>, %3, %cst_3 [1] : vector<16x32xf32> to vector<16xf32>
    %14 = vector.shape_cast %13 : vector<16xf32> to vector<16x1xf32>
    %15 = tpu.iota {dimensions = array<i32: 1>} : vector<16x32xi32>
    %c0_4 = arith.constant 0 : index
    %c0_5 = arith.constant 0 : index
    %16 = vector.load %arg3[%c0_4, %c0_5] : memref<16x1xi32, #tpu.memory_space<vmem>>, vector<16x1xi32>
    %17 = vector.broadcast %16 : vector<16x1xi32> to vector<16x32xi32>
    %18 = arith.cmpi eq, %15, %17 : vector<16x32xi32>
    %cst_6 = arith.constant 0.000000e+00 : f32
    %19 = vector.broadcast %cst_6 : f32 to vector<16x32xf32>
    %20 = arith.select %18, %3, %19 : vector<16x32xi1>, vector<16x32xf32>
    %cst_7 = arith.constant dense<0.000000e+00> : vector<16xf32>
    %21 = vector.multi_reduction <add>, %20, %cst_7 [1] : vector<16x32xf32> to vector<16xf32>
    %22 = vector.shape_cast %21 : vector<16xf32> to vector<16x1xf32>
    %cst_8 = arith.constant 0.899999976 : f32
    %23 = vector.broadcast %cst_8 : f32 to vector<16x1xf32>
    %24 = arith.mulf %23, %22 : vector<16x1xf32>
    %25 = arith.subf %12, %24 : vector<16x1xf32>
    %cst_9 = arith.constant 3.125000e-03 : f32
    %26 = vector.broadcast %cst_9 : f32 to vector<16x1xf32>
    %27 = arith.mulf %26, %14 : vector<16x1xf32>
    %28 = arith.subf %25, %27 : vector<16x1xf32>
    %c1_i32 = arith.constant 1 : i32
    %29 = arith.muli %arg0, %c1_i32 : i32
    %30 = arith.addi %29, %arg1 : i32
    %c16_i32 = arith.constant 16 : i32
    %31 = arith.muli %30, %c16_i32 : i32
    %32 = tpu.iota {dimensions = array<i32: 0>} : vector<16x1xi32>
    %33 = vector.broadcast %31 : i32 to vector<16x1xi32>
    %34 = arith.addi %33, %32 : vector<16x1xi32>
    %c16_i32_10 = arith.constant 16 : i32
    %35 = vector.broadcast %c16_i32_10 : i32 to vector<16x1xi32>
    %36 = arith.cmpi slt, %34, %35 : vector<16x1xi32>
    %cst_11 = arith.constant 0.000000e+00 : f32
    %37 = vector.broadcast %cst_11 : f32 to vector<16x1xf32>
    %38 = arith.select %36, %28, %37 : vector<16x1xi1>, vector<16x1xf32>
    %c0_12 = arith.constant 0 : index
    %c0_13 = arith.constant 0 : index
    %39 = vector.load %arg5[%c0_12, %c0_13] : memref<16x1xf32, #tpu.memory_space<vmem>>, vector<16x1xf32>
    %40 = arith.addf %39, %38 : vector<16x1xf32>
    %c0_14 = arith.constant 0 : index
    %c0_15 = arith.constant 0 : index
    %41 = vector.load %arg5[%c0_14, %c0_15] : memref<16x1xf32, #tpu.memory_space<vmem>>, vector<16x1xf32>
    tpu.vector_store %arg5[%c0_14, %c0_15], %40 {strides = array<i32>} : memref<16x1xf32, #tpu.memory_space<vmem>>, vector<16x1xf32>,
    %c0_i32_16 = arith.constant 0 : i32
    %42 = arith.cmpi eq, %arg1, %c0_i32_16 : i32
    %43 = arith.extui %42 : i1 to i32
    %c0_i32_17 = arith.constant 0 : i32
    %44 = arith.cmpi ne, %43, %c0_i32_17 : i32
    scf.if %44 {
      %c0_18 = arith.constant 0 : index
      %c0_19 = arith.constant 0 : index
      %45 = vector.load %arg5[%c0_18, %c0_19] : memref<16x1xf32, #tpu.memory_space<vmem>>, vector<16x1xf32>
      %cst_20 = arith.constant dense<0.000000e+00> : vector<1xf32>
      %46 = vector.multi_reduction <add>, %45, %cst_20 [0] : vector<16x1xf32> to vector<1xf32>
      %47 = vector.shape_cast %46 : vector<1xf32> to vector<1x1xf32>
      %48 = vector.shape_cast %47 : vector<1x1xf32> to vector<1x1xf32>
      %49 = vector.broadcast %48 : vector<1x1xf32> to vector<8x128xf32>
      %c0_21 = arith.constant 0 : index
      %c0_22 = arith.constant 0 : index
      %50 = vector.load %arg4[%c0_21, %c0_22] : memref<8x128xf32, #tpu.memory_space<vmem>>, vector<8x128xf32>
      tpu.vector_store %arg4[%c0_21, %c0_22], %49 {strides = array<i32>} : memref<8x128xf32, #tpu.memory_space<vmem>>, vector<8x128xf32>,
    } else {
    }
    return
  }
  func.func @transform_0(%arg0: i32, %arg1: i32) -> (i32, i32) {
    %c1_i32 = arith.constant 1 : i32
    %0 = arith.muli %arg0, %c1_i32 : i32
    %1 = arith.addi %0, %arg1 : i32
    %c0_i32 = arith.constant 0 : i32
    %2 = arith.minsi %1, %c0_i32 : i32
    %c0_i32_0 = arith.constant 0 : i32
    %c0_i32_1 = arith.constant 0 : i32
    return %2, %c0_i32_0 : i32, i32
  }
  func.func @transform_1(%arg0: i32, %arg1: i32) -> (i32, i32) {
    %c1_i32 = arith.constant 1 : i32
    %0 = arith.muli %arg0, %c1_i32 : i32
    %1 = arith.addi %0, %arg1 : i32
    %c0_i32 = arith.constant 0 : i32
    %2 = arith.minsi %1, %c0_i32 : i32
    %c0_i32_0 = arith.constant 0 : i32
    %c0_i32_1 = arith.constant 0 : i32
    return %2, %c0_i32_0 : i32, i32
  }
  func.func @transform_2(%arg0: i32, %arg1: i32) -> (i32, i32) {
    %c0_i32 = arith.constant 0 : i32
    %c0_i32_0 = arith.constant 0 : i32
    return %arg0, %c0_i32 : i32, i32
  }
}

</mosaic_0001>

<llo_original>
// kernel: tpu_custom_call.1
$region0: #{tpu_custom_call.1}
  #allocation0 [shape = 'u32[]', space=smem, size = 0x4, offset = 0x4, fixed_abs, tag = 'smem constant byte address 0x4 - core index']
  #allocation1 [shape = 'u32[144,128]{1,0:T(1,128)}', space=vmem, size = 0x12000, scoped, tag = 'internal scratch']
  #allocation2 [shape = 'f32[16,1]{1,0:T(8,128)}', space=vmem, size = 0x2000, scoped, tag = 'scratch operand']
  %s0 = inlined_call_operand.vmem [shape: f32[16,32], index: 0, kind: input, shape index: {}]
  %s1 = inlined_call_operand.vmem [shape: s32[16,1], index: 1, kind: input, shape index: {}]
  %s2 = inlined_call_operand.hbm [shape: f32[8,128], index: 2, kind: output, shape index: {}]
  %s3 = sld [smem:[#allocation0]]
  $region26: #{tpu_custom_call.1} parent=0
    _
  %s5 = ssub.s32 1, %s3
  %s6 = scalar_select 0, %s5, %s3
  $region1: #{tpu_custom_call.1} parent=0
    #allocation3 [shape = 'u8[4096]{0}', space=vmem, size = 0x1000, scoped, tag = 'output window, operand 0, single buffered']
    #allocation4 [shape = 's32[1]{0}', space=sflag, size = 0x4, scoped, tag = 'scoped memory for tpu_custom_call.1']
    %7 = vsyncpa [#allocation4], 0
    // Predicated region
    $region2: #{tpu_custom_call.1} parent=1 // pred_check
      _
    $region3: #{tpu_custom_call.1} parent=1 // pred_check_branch
      %9 = sbr.rel (0) target = $region5
    $region4: #{tpu_custom_call.1} parent=1 // pred_region
      %s10 = sadd.s32 0, 0
      %p11 = scmp.lt.s32.totalorder %s10, 0
      %s12 = scalar_select %p11, %s10, 0
      %s13 = smul.u32 2, %s12
      %p14 = scmp.lt.s32.totalorder %s13, 1
      %s15 = scalar_select %p14, %s13, 1
      %s16 = smul.addr %s15, 8
      %s17 = scalar_lea.vmem %s0, %s16
      %s18 = sadd.s32 0, 0
      %p19 = scmp.lt.s32.totalorder %s18, 0
      %s20 = scalar_select %p19, %s18, 0
      %s21 = smul.u32 2, %s20
    $region5: #{tpu_custom_call.1} parent=1 // pred_fallthru
      _
    // Predicated region
    $region6: #{tpu_custom_call.1} parent=1 // pred_check
      _
    $region7: #{tpu_custom_call.1} parent=1 // pred_check_branch
      %23 = sbr.rel (0) target = $region9
    $region8: #{tpu_custom_call.1} parent=1 // pred_region
      %s24 = sadd.s32 0, 0
      %p25 = scmp.lt.s32.totalorder %s24, 0
      %s26 = scalar_select %p25, %s24, 0
      %s27 = smul.u32 2, %s26
      %p28 = scmp.lt.s32.totalorder %s27, 1
      %s29 = scalar_select %p28, %s27, 1
      %s30 = smul.addr %s29, 8
      %s31 = scalar_lea.vmem %s1, %s30
      %s32 = sadd.s32 0, 0
      %p33 = scmp.lt.s32.totalorder %s32, 0
      %s34 = scalar_select %p33, %s32, 0
      %s35 = smul.u32 2, %s34
    $region9: #{tpu_custom_call.1} parent=1 // pred_fallthru
      _
    %s36 = sadd.s32 0, 0
    %p37 = scmp.lt.s32.totalorder %s36, 0
    %s38 = scalar_select %p37, %s36, 0
    %s39 = smul.u32 2, %s38
    %p40 = scmp.lt.s32.totalorder %s39, 1
    %s41 = scalar_select %p40, %s39, 1
    %s42 = smul.addr %s41, 8
    %s43 = scalar_lea.vmem %s0, %s42
    %s44 = sadd.s32 0, 0
    %p45 = scmp.lt.s32.totalorder %s44, 0
    %s46 = scalar_select %p45, %s44, 0
    %s47 = smul.u32 2, %s46
    %p48 = scmp.lt.s32.totalorder %s47, 1
    %s49 = scalar_select %p48, %s47, 1
    %s50 = smul.addr %s49, 8
    %s51 = scalar_lea.vmem %s1, %s50
    %s52 = sadd.s32 0, 0
    %p53 = scmp.lt.s32.totalorder %s52, 0
    %s54 = scalar_select %p53, %s52, 0
    %s55 = smul.u32 2, %s54
    %p56 = scmp.lt.s32.totalorder %s55, 1
    %s57 = scalar_select %p56, %s55, 1
    %s58 = smul.addr %s57, 8
    %s59 = scalar_lea.vmem %s0, %s58
    %s60 = sadd.s32 0, 0
    %p61 = scmp.lt.s32.totalorder %s60, 0
    %s62 = scalar_select %p61, %s60, 0
    %s63 = smul.u32 2, %s62
    %s64 = sadd.s32 0, 0
    %p65 = scmp.lt.s32.totalorder %s64, 0
    %s66 = scalar_select %p65, %s64, 0
    %s67 = smul.u32 2, %s66
    %p68 = scmp.lt.s32.totalorder %s67, 1
    %s69 = scalar_select %p68, %s67, 1
    %s70 = smul.addr %s69, 8
    %s71 = scalar_lea.vmem %s1, %s70
    %s72 = sadd.s32 0, 0
    %p73 = scmp.lt.s32.totalorder %s72, 0
    %s74 = scalar_select %p73, %s72, 0
    %s75 = smul.u32 2, %s74
    %p76 = scmp.eq.s32.totalorder 0, 0
    // Predicated region
    $region10: #{tpu_custom_call.1} parent=1 // pred_check
      %p77 = pneg %p76
    $region11: #{tpu_custom_call.1} parent=1 // pred_check_branch
      %79 = sbr.rel (%p77) target = $region13
    $region12: #{tpu_custom_call.1} parent=1 // pred_region
      %vm80 = vcmask 7168
      %81 = vst.msk [vmem:[#allocation2] sm:$0xff] %vm80, 0.0
      %82 = vst.msk [vmem:[#allocation2 + $0x8] sm:$0xff] %vm80, 0.0
    $region13: #{tpu_custom_call.1} parent=1 // pred_fallthru
      _
    %v83 = vld [vmem:[%s59] sm:$0xff]
    %v84 = vld [vmem:[%s59 + $0x8] sm:$0xff]
    %vm85 = vcmask 261120
    %v86 = vsel %vm85, %v83, -inf
    %87 = vmax.xlane.f32.xlu0 %v86
    %v88 = vpop.xlane.xlu0 %87
    %v89 = vsel %vm85, %v84, -inf
    %90 = vmax.xlane.f32.xlu0 %v89
    %v91 = vpop.xlane.xlu0 %90
    %v92 = vsub.f32 %v83, %v88
    %v93 = vsub.f32 %v84, %v91
    %v94 = vmul.f32 %v92, 1.442695
    %v95 = vpow.pop %v94
    %v96 = vmul.f32 %v93, 1.442695
    %v97 = vpow.pop %v96
    %v98 = vsel %vm85, %v95, 0.0
    %99 = vadd.xlane.f32.xlu0 %v98
    %v100 = vpop.xlane.xlu0 %99
    %v101 = vsel %vm85, %v97, 0.0
    %102 = vadd.xlane.f32.xlu0 %v101
    %v103 = vpop.xlane.xlu0 %102
    %v104 = vlog2.pop %v100
    %v105 = vmul.f32 %v104, 0.6931472
    %v106 = vlog2.pop %v103
    %v107 = vmul.f32 %v106, 0.6931472
    %v108 = vadd.f32 %v105, %v88
    %v109 = vadd.f32 %v107, %v91
    %v110 = vsel %vm85, %v83, 0.0
    %111 = vadd.xlane.f32.xlu0 %v110
    %v112 = vpop.xlane.xlu0 %111
    %v113 = vsel %vm85, %v84, 0.0
    %114 = vadd.xlane.f32.xlu0 %v113
    %v115 = vpop.xlane.xlu0 %114
    %v116 = vlaneseq
    %v117 = vand.u32 %v116, 127
    %v118 = vld [vmem:[%s71] sm:$0xff]
    %v119 = vld [vmem:[%s71 + $0x8] sm:$0xff]
    %120 = vset.pattern.permute.xlu0 0
    %121 = vperm.xlu0 %120, %v118
    %v122 = vpop.permute.xlu0 %121
    %123 = vset.pattern.permute.xlu0 0
    %124 = vperm.xlu0 %123, %v119
    %v125 = vpop.permute.xlu0 %124
    %vm126 = vcmp.eq.s32.totalorder %v117, %v122
    %vm127 = vcmp.eq.s32.totalorder %v117, %v125
    %v128 = vsel %vm126, %v83, 0.0
    %v129 = vsel %vm127, %v84, 0.0
    %v130 = vsel %vm85, %v128, 0.0
    %131 = vadd.xlane.f32.xlu0 %v130
    %v132 = vpop.xlane.xlu0 %131
    %v133 = vsel %vm85, %v129, 0.0
    %134 = vadd.xlane.f32.xlu0 %v133
    %v135 = vpop.xlane.xlu0 %134
    %v136 = vmul.f32 %v132, 0.9
    %v137 = vmul.f32 %v135, 0.9
    %v138 = vsub.f32 %v108, %v136
    %v139 = vsub.f32 %v109, %v137
    %v140 = vmul.f32 %v112, 0.003125
    %v141 = vmul.f32 %v115, 0.003125
    %v142 = vsub.f32 %v138, %v140
    %v143 = vsub.f32 %v139, %v141
    %s144 = sadd.s32 0, 0
    %s145 = smul.u32 %s144, 16
    %v146 = vlaneseq
    %v147 = vshrl.u32 %v146, 7
    %v148 = vadd.s32 %v147, 8
    %v149 = vstv %s145
    %v150 = vadd.s32 %v149, %v147
    %v151 = vadd.s32 %v149, %v148
    %vm152 = vcmp.lt.s32.totalorder %v150, 16
    %vm153 = vcmp.lt.s32.totalorder %v151, 16
    %v154 = vsel %vm152, %v142, 0.0
    %v155 = vsel %vm153, %v143, 0.0
    %v156 = vld [vmem:[#allocation2] sm:$0xff]
    %v157 = vld [vmem:[#allocation2 + $0x8] sm:$0xff]
    %v158 = vadd.f32 %v156, %v154
    %v159 = vadd.f32 %v157, %v155
    %vm160 = vcmask 7168
    %161 = vst.msk [vmem:[#allocation2] sm:$0xff] %vm160, %v158
    %162 = vst.msk [vmem:[#allocation2 + $0x8] sm:$0xff] %vm160, %v159
    // Predicated region
    $region14: #{tpu_custom_call.1} parent=1 // pred_check
      %p163 = pneg %p76
    $region15: #{tpu_custom_call.1} parent=1 // pred_check_branch
      %165 = sbr.rel (%p163) target = $region17
    $region16: #{tpu_custom_call.1} parent=1 // pred_region
      %v166 = vld [vmem:[#allocation2] sm:$0xff]
      %v167 = vld [vmem:[#allocation2 + $0x8] sm:$0xff]
      %v168 = vsel %vm160, %v166, 0.0
      %v169 = vsel %vm160, %v167, 0.0
      %v170 = vadd.f32 %v168, %v169
      %v171 = vrot.slane %v170, 4
      %v172 = vadd.f32 %v170, %v171
      %v173 = vrot.slane %v172, 2
      %v174 = vadd.f32 %v172, %v173
      %v175 = vrot.slane %v174, 1
      %v176 = vadd.f32 %v174, %v175
      %178 = vset.pattern.permute.xlu0 0
      %179 = vperm.xlu0 %178, %v176
      %v180 = vpop.permute.xlu0 %179
      %182 = vst [vmem:[#allocation3] sm:$0xff] %v180
    $region17: #{tpu_custom_call.1} parent=1 // pred_fallthru
      _
    // Predicated region
    $region18: #{tpu_custom_call.1} parent=1 // pred_check
      _
    $region19: #{tpu_custom_call.1} parent=1 // pred_check_branch
      %184 = sbr.rel (0) target = $region21
    $region20: #{tpu_custom_call.1} parent=1 // pred_region
      %s186 = ssub.s32 128, 128
      %187 = vsyncadd [#allocation4], %s186
      %s189 = sshll.u32 [#allocation3], 4
      %s190 = int_to_ptr.vmem [resolvable:$true] %s189
      %192 = dma.vmem_to_hbm [thread:$0]  %s190, 128, %s2, [#allocation4]
    $region21: #{tpu_custom_call.1} parent=1 // pred_fallthru
      _
    // Predicated region
    $region22: #{tpu_custom_call.1} parent=1 // pred_check
      _
    $region23: #{tpu_custom_call.1} parent=1 // pred_check_branch
      %194 = sbr.rel (0) target = $region25
    $region24: #{tpu_custom_call.1} parent=1 // pred_region
      %195 = dma.done [#allocation4], 128
    $region25: #{tpu_custom_call.1} parent=1 // pred_fallthru
      _
    %196 = vsyncpa [#allocation4], 1

</llo_original>
